<compile_context>
chip_gen: v7x
topology: tpu7x:2x2x1
jax: 0.10.0
libtpu: 0.0.40
codegen_flags: <defaults>
</compile_context>

<pallas_src>
import math
import functools

import jax
import jax.numpy as jnp
from jax import lax
from jax.experimental import pallas as pl
from jax.experimental.pallas import tpu as pltpu


_VMEM_LIMIT_BYTES = 32 * 1024 * 1024       # safe on v5e/v6e (128 MiB) and v7x (64 MiB)
_TARGET_X_BLOCK_BYTES = 2 * 1024 * 1024    # ~85% of HBM roofline regime for tiled adds


# ----------------------------- kernels ------------------------------------


def _replicate_pe(pe_blk, batch):
    # (TS, D) -> (TS, B*D), matching the element order of x.reshape(S, B*D):
    # out[s, b*D + d] = pe_blk[s, d].  Lane-concat is cheap VMEM work.
    if batch == 1:
        return pe_blk
    return jnp.concatenate([pe_blk] * batch, axis=1)


def _pe_add_kernel(x_ref, pe_ref, o_ref, *, batch):
    o_ref[...] = x_ref[...] + _replicate_pe(pe_ref[...], batch)


def _fmix32(h):
    # murmur3 finalizer: good avalanche, pure 32-bit VPU integer work.
    h = h ^ (h >> 16)
    h = h * jnp.uint32(0x85EBCA6B)
    h = h ^ (h >> 13)
    h = h * jnp.uint32(0xC2B2AE35)
    h = h ^ (h >> 16)
    return h


def _pe_add_dropout_kernel(seed_ref, x_ref, pe_ref, o_ref, *,
                           batch, block_rows, threshold, scale):
    y = x_ref[...] + _replicate_pe(pe_ref[...], batch)

    # Counter-based PRNG: hash of (seed, global element index).
    shape = y.shape                                        # (block_rows, B*D), static
    rows = lax.broadcasted_iota(jnp.int32, shape, 0).astype(jnp.uint32)
    cols = lax.broadcasted_iota(jnp.int32, shape, 1).astype(jnp.uint32)
    row0 = pl.program_id(0).astype(jnp.uint32) * jnp.uint32(block_rows)
    gid = (rows + row0) * jnp.uint32(shape[1]) + cols      # wraps harmlessly (hash input)
    seed_mix = seed_ref[0].astype(jnp.uint32) * jnp.uint32(0x9E3779B9)
    bits = _fmix32(gid ^ seed_mix)

    keep = bits >= jnp.uint32(threshold)                   # P(keep) = 1 - p
    o_ref[...] = jnp.where(keep, y * scale, jnp.zeros_like(y))


# ----------------------------- wrappers ------------------------------------


def make_positional_encoding_table(d_model, max_len=5000, dtype=jnp.float32):
    """Deterministic replica of the PyTorch buffer `pe`: shape (max_len, 1, d_model)."""
    assert d_model % 2 == 0, "d_model must be even (same assumption as the PyTorch module)"
    position = jnp.arange(max_len, dtype=jnp.float32)[:, None]              # (max_len, 1)
    div_term = jnp.exp(
        jnp.arange(0, d_model, 2, dtype=jnp.float32) * (-math.log(10000.0) / d_model)
    )                                                                        # (d_model/2,)
    pe = jnp.zeros((max_len, d_model), jnp.float32)
    pe = pe.at[:, 0::2].set(jnp.sin(position * div_term))
    pe = pe.at[:, 1::2].set(jnp.cos(position * div_term))
    return pe[:, None, :].astype(dtype)                                      # (max_len, 1, d_model)


def _choose_block_rows(seq_len, row_bytes):
    """Rows per grid step: ~2 MiB x-blocks, sublane dim kept a multiple of 8."""
    ts = max(1, _TARGET_X_BLOCK_BYTES // max(int(row_bytes), 1))
    ts = min(ts, seq_len)
    if ts < seq_len:
        ts = max(8, (ts // 8) * 8)
        ts = min(ts, seq_len)
    return int(ts)


def positional_encoding_forward(x, pe, *, p=0.1, training=False, seed=0):
    """Forward: dropout(x + pe[:S]) with x of shape (S, B, D), pe of shape (max_len, 1, D)."""
    S, B, D = x.shape
    BD = B * D

    if training and p >= 1.0:
        return jnp.zeros_like(x)          # torch dropout with p=1 zeros everything

    # Lane/sublane-dense 2-D views (merging/splitting minor dims is a free reshape).
    x2 = x.reshape(S, BD)
    pe2 = jnp.reshape(pe, (pe.shape[0], D)).astype(x.dtype)   # (max_len, D)

    ts = _choose_block_rows(S, BD * x.dtype.itemsize)
    if ts % 8 != 0:
        # Tiny-S fallback (S < 8 or similar): make the pe block equal its full
        # array so the (8,128) block rule is satisfied.  Copy is only S*D elems.
        pe2 = pe2[:S]
    grid = (pl.cdiv(S, ts),)

    cparams = pltpu.CompilerParams(
        dimension_semantics=("parallel",),
        vmem_limit_bytes=_VMEM_LIMIT_BYTES,
    )

    if (not training) or p <= 0.0:
        out2 = pl.pallas_call(
            functools.partial(_pe_add_kernel, batch=B),
            out_shape=jax.ShapeDtypeStruct((S, BD), x.dtype),
            grid=grid,
            in_specs=[
                pl.BlockSpec((ts, BD), lambda i: (i, 0)),
                pl.BlockSpec((ts, D), lambda i: (i, 0)),
            ],
            out_specs=pl.BlockSpec((ts, BD), lambda i: (i, 0)),
            compiler_params=cparams,
        )(x2, pe2)
        return out2.reshape(S, B, D)

    # Training: fused add + inverted dropout.
    threshold = min(int(round(p * 4294967296.0)), 4294967295)
    scale = 1.0 / (1.0 - p)
    seed_arr = jnp.asarray([seed], dtype=jnp.int32)
    kernel = functools.partial(
        _pe_add_dropout_kernel,
        batch=B, block_rows=ts, threshold=threshold, scale=scale,
    )
    out2 = pl.pallas_call(
        kernel,
        out_shape=jax.ShapeDtypeStruct((S, BD), x.dtype),
        grid_spec=pltpu.PrefetchScalarGridSpec(
            num_scalar_prefetch=1,
            grid=grid,
            in_specs=[
                pl.BlockSpec((ts, BD), lambda i, seed_ref: (i, 0)),
                pl.BlockSpec((ts, D), lambda i, seed_ref: (i, 0)),
            ],
            out_specs=pl.BlockSpec((ts, BD), lambda i, seed_ref: (i, 0)),
        ),
        compiler_params=cparams,
    )(seed_arr, x2, pe2)
    return out2.reshape(S, B, D)


# ----------------------------- demo / check ---------------------------------


if __name__ == "__main__":
    seq_len, batch, d_model = 8, 2, 32
    max_len = 64  # small but > seq_len; semantics identical to max_len=5000

    key = jax.random.PRNGKey(0)
    x = jax.random.normal(key, (seq_len, batch, d_model), dtype=jnp.float32)
    pe = make_positional_encoding_table(d_model, max_len=max_len)

    # Eval-mode forward (dropout is identity): exact check vs reference.
    out_eval = jax.block_until_ready(
        positional_encoding_forward(x, pe, p=0.1, training=False))
    ref = x + pe[:seq_len]                       # broadcast (S,1,D) over batch
    assert out_eval.shape == (seq_len, batch, d_model)
    assert jnp.allclose(out_eval, ref, atol=1e-6, rtol=1e-6)

    # Training-mode forward (inverted dropout with in-kernel hash PRNG).
    # TODO(synk): dropout mask cannot bit-match torch's RNG stream; only the
    # keep-prob / 1/(1-p) scaling semantics match.
    p = 0.1
    out_train = jax.block_until_ready(
        positional_encoding_forward(x, pe, p=p, training=True, seed=42))
    assert out_train.shape == (seq_len, batch, d_model)
    assert bool(jnp.all(jnp.isfinite(out_train)))
    scaled = ref / (1.0 - p)
    ok = (out_train == 0) | (jnp.abs(out_train - scaled) < 1e-4)
    assert bool(jnp.all(ok))                     # every element is dropped or scaled
    assert bool(jnp.any(out_train != 0))         # not everything dropped
    assert bool(jnp.any(out_train == 0))         # dropout actually happened

    print("KERNEL_OK")
</pallas_src>

<mosaic_0001>
module attributes {stable_mosaic.version = 11 : i64} {
  func.func @_pe_add_kernel(%arg0: i32, %arg1: memref<8x64xf32, #tpu.memory_space<vmem>>, %arg2: memref<8x32xf32, #tpu.memory_space<vmem>>, %arg3: memref<8x64xf32, #tpu.memory_space<vmem>>) attributes {dimension_semantics = [#tpu.dimension_semantics<parallel>], iteration_bounds = array<i64: 1>, scalar_prefetch = 0 : i64, scratch_operands = 0 : i64, tpu.core_type = #tpu.core_type<tc>, window_params = [{transform_indices = @transform_0, window_bounds = array<i64: 8, 64>}, {transform_indices = @transform_1, window_bounds = array<i64: 8, 32>}, {transform_indices = @transform_2, window_bounds = array<i64: 8, 64>}]} {
    %c0 = arith.constant 0 : index
    %c0_0 = arith.constant 0 : index
    %0 = vector.load %arg1[%c0, %c0_0] : memref<8x64xf32, #tpu.memory_space<vmem>>, vector<8x64xf32>
    %c0_1 = arith.constant 0 : index
    %c0_2 = arith.constant 0 : index
    %1 = vector.load %arg2[%c0_1, %c0_2] : memref<8x32xf32, #tpu.memory_space<vmem>>, vector<8x32xf32>
    %2 = tpu.concatenate %1, %1 in 1 : vector<8x32xf32>, vector<8x32xf32> -> vector<8x64xf32>
    %3 = arith.addf %0, %2 : vector<8x64xf32>
    %c0_3 = arith.constant 0 : index
    %c0_4 = arith.constant 0 : index
    %4 = vector.load %arg3[%c0_3, %c0_4] : memref<8x64xf32, #tpu.memory_space<vmem>>, vector<8x64xf32>
    tpu.vector_store %arg3[%c0_3, %c0_4], %3 {strides = array<i32>} : memref<8x64xf32, #tpu.memory_space<vmem>>, vector<8x64xf32>,
    return
  }
  func.func @transform_0(%arg0: i32) -> (i32, i32) {
    %c0_i32 = arith.constant 0 : i32
    %c0_i32_0 = arith.constant 0 : i32
    return %arg0, %c0_i32 : i32, i32
  }
  func.func @transform_1(%arg0: i32) -> (i32, i32) {
    %c0_i32 = arith.constant 0 : i32
    %c0_i32_0 = arith.constant 0 : i32
    return %arg0, %c0_i32 : i32, i32
  }
  func.func @transform_2(%arg0: i32) -> (i32, i32) {
    %c0_i32 = arith.constant 0 : i32
    %c0_i32_0 = arith.constant 0 : i32
    return %arg0, %c0_i32 : i32, i32
  }
}

</mosaic_0001>

<llo_original>
// kernel: tpu_custom_call.1
$region0: #{tpu_custom_call.1}
  #allocation0 [shape = 'u32[]', space=smem, size = 0x4, offset = 0x4, fixed_abs, tag = 'smem constant byte address 0x4 - core index']
  #allocation1 [shape = 'u32[144,128]{1,0:T(1,128)}', space=vmem, size = 0x12000, scoped, tag = 'internal scratch']
  %s0 = inlined_call_operand.vmem [shape: f32[8,64], index: 0, kind: input, shape index: {}]
  %s1 = inlined_call_operand.vmem [shape: f32[64,32], index: 1, kind: input, shape index: {}]
  %s2 = inlined_call_operand.hbm [shape: f32[8,64], index: 2, kind: output, shape index: {}]
  %s3 = sld [smem:[#allocation0]]
  $region18: #{tpu_custom_call.1} parent=0
    _
  %s5 = ssub.s32 1, %s3
  %s6 = scalar_select 0, %s5, %s3
  $region1: #{tpu_custom_call.1} parent=0
    #allocation2 [shape = 'u8[4096]{0}', space=vmem, size = 0x1000, scoped, tag = 'output window, operand 0, single buffered']
    #allocation3 [shape = 's32[1]{0}', space=sflag, size = 0x4, scoped, tag = 'scoped memory for tpu_custom_call.1']
    %7 = vsyncpa [#allocation3], 0
    // Predicated region
    $region2: #{tpu_custom_call.1} parent=1 // pred_check
      _
    $region3: #{tpu_custom_call.1} parent=1 // pred_check_branch
      %9 = sbr.rel (0) target = $region5
    $region4: #{tpu_custom_call.1} parent=1 // pred_region
      _
    $region5: #{tpu_custom_call.1} parent=1 // pred_fallthru
      _
    // Predicated region
    $region6: #{tpu_custom_call.1} parent=1 // pred_check
      _
    $region7: #{tpu_custom_call.1} parent=1 // pred_check_branch
      %11 = sbr.rel (0) target = $region9
    $region8: #{tpu_custom_call.1} parent=1 // pred_region
      _
    $region9: #{tpu_custom_call.1} parent=1 // pred_fallthru
      _
    %v12 = vld [vmem:[%s0] sm:$0xff]
    %v13 = vld [vmem:[%s1] sm:$0xff]
    %15 = vrot.lane.b32.xlu0 %v13, 32
    %v16 = vpop.permute.xlu0 %15
    %vm18 = vcmask 261120
    %v19 = vsel %vm18, %v13, %v16
    %v20 = vadd.f32 %v12, %v19
    %vm21 = vcmask 523264
    %22 = vst.msk [vmem:[#allocation2] sm:$0xff] %vm21, %v20
    // Predicated region
    $region10: #{tpu_custom_call.1} parent=1 // pred_check
      _
    $region11: #{tpu_custom_call.1} parent=1 // pred_check_branch
      %24 = sbr.rel (0) target = $region13
    $region12: #{tpu_custom_call.1} parent=1 // pred_region
      %s26 = ssub.s32 128, 128
      %27 = vsyncadd [#allocation3], %s26
      %s29 = sshll.u32 [#allocation2], 4
      %s30 = int_to_ptr.vmem [resolvable:$true] %s29
      %32 = dma.vmem_to_hbm [thread:$0]  %s30, 128, %s2, [#allocation3]
    $region13: #{tpu_custom_call.1} parent=1 // pred_fallthru
      _
    // Predicated region
    $region14: #{tpu_custom_call.1} parent=1 // pred_check
      _
    $region15: #{tpu_custom_call.1} parent=1 // pred_check_branch
      %34 = sbr.rel (0) target = $region17
    $region16: #{tpu_custom_call.1} parent=1 // pred_region
      %35 = dma.done [#allocation3], 128
    $region17: #{tpu_custom_call.1} parent=1 // pred_fallthru
      _
    %36 = vsyncpa [#allocation3], 1

</llo_original>
